<compile_context>
chip_gen: v7x
topology: tpu7x:2x2x1
jax: 0.10.0
libtpu: 0.0.40
codegen_flags: <defaults>
</compile_context>

<pallas_src>
import jax
import jax.numpy as jnp
from jax.experimental import pallas as pl
from jax.experimental.pallas import tpu as pltpu

H1, H2, H3, OUT = 512, 256, 128, 2
OUT_PAD = 128            # lane-dense padded width of the 2-wide head


def _round_up(x, m):
    return -(-x // m) * m


def classifier_kernel(x_ref, w1_ref, b1_ref, w2_ref, b2_ref,
                      w3_ref, b3_ref, w4_ref, b4_ref, o_ref):
    """Fused Linear->ReLU x3 -> Linear -> Sigmoid on one batch tile."""
    x = x_ref[...].astype(jnp.bfloat16)                               # (TB, latent)

    h = jnp.dot(x, w1_ref[...], preferred_element_type=jnp.float32)
    h = jnp.maximum(h + b1_ref[...], 0.0)                             # (TB, 512) f32

    h = jnp.dot(h.astype(jnp.bfloat16), w2_ref[...],
                preferred_element_type=jnp.float32)
    h = jnp.maximum(h + b2_ref[...], 0.0)                             # (TB, 256) f32

    h = jnp.dot(h.astype(jnp.bfloat16), w3_ref[...],
                preferred_element_type=jnp.float32)
    h = jnp.maximum(h + b3_ref[...], 0.0)                             # (TB, 128) f32

    logits = jnp.dot(h.astype(jnp.bfloat16), w4_ref[...],
                     preferred_element_type=jnp.float32) + b4_ref[...]  # (TB, 128)
    # Sigmoid epilogue: exp and approximate reciprocal both go to the EUP slot.
    o_ref[...] = pl.reciprocal(1.0 + jnp.exp(-logits),
                               approx=True).astype(o_ref.dtype)


def prepare_classifier_params(params):
    """One-time prep (do this at model load, NOT per forward call):
    transpose PyTorch (out, in) weights to (in, out), cast matmul operands to
    bf16, keep biases f32, and pad the 2-wide head to 128 output lanes."""
    (w1, b1), (w2, b2), (w3, b3), (w4, b4) = params
    latent = w1.shape[1]
    assert w1.shape == (H1, latent) and w2.shape == (H2, H1)
    assert w3.shape == (H3, H2) and w4.shape == (OUT, H3)

    w1t = jnp.transpose(w1).astype(jnp.bfloat16)                      # (latent, 512)
    w2t = jnp.transpose(w2).astype(jnp.bfloat16)                      # (512, 256)
    w3t = jnp.transpose(w3).astype(jnp.bfloat16)                      # (256, 128)
    w4t = jnp.pad(jnp.transpose(w4),
                  ((0, 0), (0, OUT_PAD - OUT))).astype(jnp.bfloat16)  # (128, 128)

    b1r = b1.reshape(1, H1).astype(jnp.float32)
    b2r = b2.reshape(1, H2).astype(jnp.float32)
    b3r = b3.reshape(1, H3).astype(jnp.float32)
    b4r = jnp.pad(b4.reshape(1, OUT).astype(jnp.float32),
                  ((0, 0), (0, OUT_PAD - OUT)))                       # (1, 128)
    return (w1t, b1r, w2t, b2r, w3t, b3r, w4t, b4r)


def classifier_forward(x, prepared, *, block_b=256):
    """x: (B, latent) float array; prepared: prepare_classifier_params output."""
    w1t, b1r, w2t, b2r, w3t, b3r, w4t, b4r = prepared
    B, latent = x.shape
    assert w1t.shape == (latent, H1)

    # Batch tiling: a single grid step when the batch fits in one tile (no
    # pointless split on 1-TC v5e/v6e, no per-step overhead); otherwise even
    # ~block_b-row tiles (MXU-friendly M), rounded up to a multiple of 16 for
    # bf16 sublane packing.  On v7x, pass block_b=256/512 and the "parallel"
    # grid axis shards the tiles across both TensorCores only when B is large.
    num_tiles = max(1, -(-B // block_b))
    TB = _round_up(-(-B // num_tiles), 16)
    Bp = num_tiles * TB

    xp = x
    if Bp != B:
        xp = jnp.pad(xp, ((0, Bp - B), (0, 0)))

    flops = 2 * Bp * (latent * H1 + H1 * H2 + H2 * H3 + H3 * OUT_PAD)
    bytes_accessed = (2 * (latent * H1 + H1 * H2 + H2 * H3 + H3 * OUT_PAD)
                      + 4 * (H1 + H2 + H3 + OUT_PAD)
                      + xp.dtype.itemsize * Bp * latent
                      + 4 * Bp * OUT_PAD)

    def res_spec(shape):
        # Grid-resident block (constant index_map).  At this size (~0.4 MB of
        # bf16 weights) default double-buffering is harmless; for very large
        # `latent` on v7x (64 MiB VMEM) add pipeline_mode=pl.Buffered(1) here.
        return pl.BlockSpec(shape, lambda i: (0, 0))

    out = pl.pallas_call(
        classifier_kernel,
        out_shape=jax.ShapeDtypeStruct((Bp, OUT_PAD), jnp.float32),
        grid_spec=pltpu.PrefetchScalarGridSpec(
            num_scalar_prefetch=0,
            grid=(num_tiles,),
            in_specs=[
                pl.BlockSpec((TB, latent), lambda i: (i, 0)),     # x tile
                res_spec((latent, H1)), res_spec((1, H1)),        # W1, b1
                res_spec((H1, H2)),     res_spec((1, H2)),        # W2, b2
                res_spec((H2, H3)),     res_spec((1, H3)),        # W3, b3
                res_spec((H3, OUT_PAD)), res_spec((1, OUT_PAD)),  # W4, b4 (padded)
            ],
            out_specs=pl.BlockSpec((TB, OUT_PAD), lambda i: (i, 0)),
        ),
        compiler_params=pltpu.CompilerParams(
            dimension_semantics=("parallel",)),
        cost_estimate=pl.CostEstimate(
            flops=flops, transcendentals=2 * Bp * OUT_PAD,
            bytes_accessed=bytes_accessed),
    )(xp, w1t, b1r, w2t, b2r, w3t, b3r, w4t, b4r)

    return out[:B, :OUT]


def classifier_reference(x, params):
    """Pure-JAX f32 reference matching the PyTorch module (eval mode)."""
    (w1, b1), (w2, b2), (w3, b3), (w4, b4) = params
    h = jnp.maximum(x @ w1.T + b1, 0.0)
    h = jnp.maximum(h @ w2.T + b2, 0.0)
    h = jnp.maximum(h @ w3.T + b3, 0.0)
    return jax.nn.sigmoid(h @ w4.T + b4)


if __name__ == "__main__":
    key = jax.random.PRNGKey(0)
    keys = jax.random.split(key, 9)

    B, LATENT = 16, 32    # job_description['latent'] = 32
    x = jax.random.normal(keys[0], (B, LATENT), jnp.float32)

    def linear_params(kw, kb, fan_in, fan_out):
        bound = fan_in ** -0.5
        w = jax.random.uniform(kw, (fan_out, fan_in), jnp.float32, -bound, bound)
        b = jax.random.uniform(kb, (fan_out,), jnp.float32, -bound, bound)
        return w, b

    params = [
        linear_params(keys[1], keys[2], LATENT, H1),
        linear_params(keys[3], keys[4], H1, H2),
        linear_params(keys[5], keys[6], H2, H3),
        linear_params(keys[7], keys[8], H3, OUT),
    ]

    # One-time weight prep (hoisted out of the forward hot path).
    prepared = prepare_classifier_params(params)

    out = jax.block_until_ready(classifier_forward(x, prepared))
    ref = classifier_reference(x, params)

    assert out.shape == (B, OUT)
    # bf16 matmul inputs with f32 accumulation -> looser tolerance vs f32 ref.
    assert jnp.max(jnp.abs(out - ref)) < 2e-2, "mismatch vs reference"

    print("KERNEL_OK")
</pallas_src>

<mosaic_0001>
module attributes {stable_mosaic.version = 11 : i64} {
  func.func @classifier_kernel(%arg0: i32, %arg1: memref<16x32xf32, #tpu.memory_space<vmem>>, %arg2: memref<32x512xbf16, #tpu.memory_space<vmem>>, %arg3: memref<1x512xf32, #tpu.memory_space<vmem>>, %arg4: memref<512x256xbf16, #tpu.memory_space<vmem>>, %arg5: memref<1x256xf32, #tpu.memory_space<vmem>>, %arg6: memref<256x128xbf16, #tpu.memory_space<vmem>>, %arg7: memref<1x128xf32, #tpu.memory_space<vmem>>, %arg8: memref<128x128xbf16, #tpu.memory_space<vmem>>, %arg9: memref<1x128xf32, #tpu.memory_space<vmem>>, %arg10: memref<16x128xf32, #tpu.memory_space<vmem>>) attributes {dimension_semantics = [#tpu.dimension_semantics<parallel>], iteration_bounds = array<i64: 1>, scalar_prefetch = 0 : i64, scratch_operands = 0 : i64, tpu.core_type = #tpu.core_type<tc>, window_params = [{transform_indices = @transform_0, window_bounds = array<i64: 16, 32>}, {pipeline_mode = #tpu.pipeline_mode<synchronous>, transform_indices = @transform_1, window_bounds = array<i64: 32, 512>}, {pipeline_mode = #tpu.pipeline_mode<synchronous>, transform_indices = @transform_2, window_bounds = array<i64: 1, 512>}, {pipeline_mode = #tpu.pipeline_mode<synchronous>, transform_indices = @transform_3, window_bounds = array<i64: 512, 256>}, {pipeline_mode = #tpu.pipeline_mode<synchronous>, transform_indices = @transform_4, window_bounds = array<i64: 1, 256>}, {pipeline_mode = #tpu.pipeline_mode<synchronous>, transform_indices = @transform_5, window_bounds = array<i64: 256, 128>}, {pipeline_mode = #tpu.pipeline_mode<synchronous>, transform_indices = @transform_6, window_bounds = array<i64: 1, 128>}, {pipeline_mode = #tpu.pipeline_mode<synchronous>, transform_indices = @transform_7, window_bounds = array<i64: 128, 128>}, {pipeline_mode = #tpu.pipeline_mode<synchronous>, transform_indices = @transform_8, window_bounds = array<i64: 1, 128>}, {transform_indices = @transform_9, window_bounds = array<i64: 16, 128>}]} {
    %c0 = arith.constant 0 : index
    %c0_0 = arith.constant 0 : index
    %0 = vector.load %arg1[%c0, %c0_0] : memref<16x32xf32, #tpu.memory_space<vmem>>, vector<16x32xf32>
    %1 = arith.truncf %0 : vector<16x32xf32> to vector<16x32xbf16>
    %c0_1 = arith.constant 0 : index
    %c0_2 = arith.constant 0 : index
    %2 = vector.load %arg2[%c0_1, %c0_2] : memref<32x512xbf16, #tpu.memory_space<vmem>>, vector<32x512xbf16>
    %cst = arith.constant dense<0.000000e+00> : vector<16x512xf32>
    %3 = tpu.matmul %1, %2, %cst {dimension_numbers = #tpu.dot_dimension_numbers<[1], [0], [0], [1], [0, 0, 1, 1], [], []>} : vector<16x32xbf16>, vector<32x512xbf16>, vector<16x512xf32> -> vector<16x512xf32>
    %c0_3 = arith.constant 0 : index
    %c0_4 = arith.constant 0 : index
    %4 = vector.load %arg3[%c0_3, %c0_4] : memref<1x512xf32, #tpu.memory_space<vmem>>, vector<1x512xf32>
    %5 = vector.broadcast %4 : vector<1x512xf32> to vector<16x512xf32>
    %6 = arith.addf %3, %5 : vector<16x512xf32>
    %cst_5 = arith.constant 0.000000e+00 : f32
    %7 = vector.broadcast %cst_5 : f32 to vector<16x512xf32>
    %8 = arith.maximumf %6, %7 : vector<16x512xf32>
    %9 = arith.truncf %8 : vector<16x512xf32> to vector<16x512xbf16>
    %c0_6 = arith.constant 0 : index
    %c0_7 = arith.constant 0 : index
    %10 = vector.load %arg4[%c0_6, %c0_7] : memref<512x256xbf16, #tpu.memory_space<vmem>>, vector<512x256xbf16>
    %cst_8 = arith.constant dense<0.000000e+00> : vector<16x256xf32>
    %11 = tpu.matmul %9, %10, %cst_8 {dimension_numbers = #tpu.dot_dimension_numbers<[1], [0], [0], [1], [0, 0, 1, 1], [], []>} : vector<16x512xbf16>, vector<512x256xbf16>, vector<16x256xf32> -> vector<16x256xf32>
    %c0_9 = arith.constant 0 : index
    %c0_10 = arith.constant 0 : index
    %12 = vector.load %arg5[%c0_9, %c0_10] : memref<1x256xf32, #tpu.memory_space<vmem>>, vector<1x256xf32>
    %13 = vector.broadcast %12 : vector<1x256xf32> to vector<16x256xf32>
    %14 = arith.addf %11, %13 : vector<16x256xf32>
    %cst_11 = arith.constant 0.000000e+00 : f32
    %15 = vector.broadcast %cst_11 : f32 to vector<16x256xf32>
    %16 = arith.maximumf %14, %15 : vector<16x256xf32>
    %17 = arith.truncf %16 : vector<16x256xf32> to vector<16x256xbf16>
    %c0_12 = arith.constant 0 : index
    %c0_13 = arith.constant 0 : index
    %18 = vector.load %arg6[%c0_12, %c0_13] : memref<256x128xbf16, #tpu.memory_space<vmem>>, vector<256x128xbf16>
    %cst_14 = arith.constant dense<0.000000e+00> : vector<16x128xf32>
    %19 = tpu.matmul %17, %18, %cst_14 {dimension_numbers = #tpu.dot_dimension_numbers<[1], [0], [0], [1], [0, 0, 1, 1], [], []>} : vector<16x256xbf16>, vector<256x128xbf16>, vector<16x128xf32> -> vector<16x128xf32>
    %c0_15 = arith.constant 0 : index
    %c0_16 = arith.constant 0 : index
    %20 = vector.load %arg7[%c0_15, %c0_16] : memref<1x128xf32, #tpu.memory_space<vmem>>, vector<1x128xf32>
    %21 = vector.broadcast %20 : vector<1x128xf32> to vector<16x128xf32>
    %22 = arith.addf %19, %21 : vector<16x128xf32>
    %cst_17 = arith.constant 0.000000e+00 : f32
    %23 = vector.broadcast %cst_17 : f32 to vector<16x128xf32>
    %24 = arith.maximumf %22, %23 : vector<16x128xf32>
    %25 = arith.truncf %24 : vector<16x128xf32> to vector<16x128xbf16>
    %c0_18 = arith.constant 0 : index
    %c0_19 = arith.constant 0 : index
    %26 = vector.load %arg8[%c0_18, %c0_19] : memref<128x128xbf16, #tpu.memory_space<vmem>>, vector<128x128xbf16>
    %cst_20 = arith.constant dense<0.000000e+00> : vector<16x128xf32>
    %27 = tpu.matmul %25, %26, %cst_20 {dimension_numbers = #tpu.dot_dimension_numbers<[1], [0], [0], [1], [0, 0, 1, 1], [], []>} : vector<16x128xbf16>, vector<128x128xbf16>, vector<16x128xf32> -> vector<16x128xf32>
    %c0_21 = arith.constant 0 : index
    %c0_22 = arith.constant 0 : index
    %28 = vector.load %arg9[%c0_21, %c0_22] : memref<1x128xf32, #tpu.memory_space<vmem>>, vector<1x128xf32>
    %29 = vector.broadcast %28 : vector<1x128xf32> to vector<16x128xf32>
    %30 = arith.addf %27, %29 : vector<16x128xf32>
    %cst_23 = arith.constant 0.000000e+00 : f32
    %31 = vector.broadcast %cst_23 : f32 to vector<16x128xf32>
    %32 = arith.subf %31, %30 : vector<16x128xf32>
    %33 = math.exp %32 : vector<16x128xf32>
    %cst_24 = arith.constant 1.000000e+00 : f32
    %34 = vector.broadcast %cst_24 : f32 to vector<16x128xf32>
    %35 = arith.addf %34, %33 : vector<16x128xf32>
    %36 = tpu.reciprocal %35 {approx = true} : vector<16x128xf32> -> vector<16x128xf32>
    %c0_25 = arith.constant 0 : index
    %c0_26 = arith.constant 0 : index
    %37 = vector.load %arg10[%c0_25, %c0_26] : memref<16x128xf32, #tpu.memory_space<vmem>>, vector<16x128xf32>
    tpu.vector_store %arg10[%c0_25, %c0_26], %36 {strides = array<i32>} : memref<16x128xf32, #tpu.memory_space<vmem>>, vector<16x128xf32>,
    return
  }
  func.func @transform_0(%arg0: i32) -> (i32, i32) {
    %c0_i32 = arith.constant 0 : i32
    %c0_i32_0 = arith.constant 0 : i32
    return %arg0, %c0_i32 : i32, i32
  }
  func.func @transform_1(%arg0: i32) -> (i32, i32) {
    %c0_i32 = arith.constant 0 : i32
    %c0_i32_0 = arith.constant 0 : i32
    %c0_i32_1 = arith.constant 0 : i32
    return %c0_i32, %c0_i32_0 : i32, i32
  }
  func.func @transform_2(%arg0: i32) -> (i32, i32) {
    %c0_i32 = arith.constant 0 : i32
    %c0_i32_0 = arith.constant 0 : i32
    %c0_i32_1 = arith.constant 0 : i32
    return %c0_i32, %c0_i32_0 : i32, i32
  }
  func.func @transform_3(%arg0: i32) -> (i32, i32) {
    %c0_i32 = arith.constant 0 : i32
    %c0_i32_0 = arith.constant 0 : i32
    %c0_i32_1 = arith.constant 0 : i32
    return %c0_i32, %c0_i32_0 : i32, i32
  }
  func.func @transform_4(%arg0: i32) -> (i32, i32) {
    %c0_i32 = arith.constant 0 : i32
    %c0_i32_0 = arith.constant 0 : i32
    %c0_i32_1 = arith.constant 0 : i32
    return %c0_i32, %c0_i32_0 : i32, i32
  }
  func.func @transform_5(%arg0: i32) -> (i32, i32) {
    %c0_i32 = arith.constant 0 : i32
    %c0_i32_0 = arith.constant 0 : i32
    %c0_i32_1 = arith.constant 0 : i32
    return %c0_i32, %c0_i32_0 : i32, i32
  }
  func.func @transform_6(%arg0: i32) -> (i32, i32) {
    %c0_i32 = arith.constant 0 : i32
    %c0_i32_0 = arith.constant 0 : i32
    %c0_i32_1 = arith.constant 0 : i32
    return %c0_i32, %c0_i32_0 : i32, i32
  }
  func.func @transform_7(%arg0: i32) -> (i32, i32) {
    %c0_i32 = arith.constant 0 : i32
    %c0_i32_0 = arith.constant 0 : i32
    %c0_i32_1 = arith.constant 0 : i32
    return %c0_i32, %c0_i32_0 : i32, i32
  }
  func.func @transform_8(%arg0: i32) -> (i32, i32) {
    %c0_i32 = arith.constant 0 : i32
    %c0_i32_0 = arith.constant 0 : i32
    %c0_i32_1 = arith.constant 0 : i32
    return %c0_i32, %c0_i32_0 : i32, i32
  }
  func.func @transform_9(%arg0: i32) -> (i32, i32) {
    %c0_i32 = arith.constant 0 : i32
    %c0_i32_0 = arith.constant 0 : i32
    return %arg0, %c0_i32 : i32, i32
  }
}

</mosaic_0001>

<llo_original>
// kernel: tpu_custom_call.1
$region0: #{tpu_custom_call.1}
  #allocation0 [shape = 'u32[]', space=smem, size = 0x4, offset = 0x4, fixed_abs, tag = 'smem constant byte address 0x4 - core index']
  #allocation1 [shape = 'u32[144,128]{1,0:T(1,128)}', space=vmem, size = 0x12000, scoped, tag = 'internal scratch']
  %s0 = inlined_call_operand.hbm [shape: f32[16,32], index: 0, kind: input, shape index: {}]
  %s1 = inlined_call_operand.hbm [shape: bf16[32,512], index: 1, kind: input, shape index: {}]
  %s2 = inlined_call_operand.vmem [shape: f32[1,512], index: 2, kind: input, shape index: {}]
  %s3 = inlined_call_operand.hbm [shape: bf16[512,256], index: 3, kind: input, shape index: {}]
  %s4 = inlined_call_operand.vmem [shape: f32[1,256], index: 4, kind: input, shape index: {}]
  %s5 = inlined_call_operand.hbm [shape: bf16[256,128], index: 5, kind: input, shape index: {}]
  %s6 = inlined_call_operand.vmem [shape: f32[1,128], index: 6, kind: input, shape index: {}]
  %s7 = inlined_call_operand.hbm [shape: bf16[128,128], index: 7, kind: input, shape index: {}]
  %s8 = inlined_call_operand.vmem [shape: f32[1,128], index: 8, kind: input, shape index: {}]
  %s9 = inlined_call_operand.hbm [shape: f32[16,128], index: 9, kind: output, shape index: {}]
  %s10 = sld [smem:[#allocation0]]
  $region66: #{tpu_custom_call.1} parent=0
    _
  %s12 = ssub.s32 1, %s10
  %s13 = scalar_select 0, %s12, %s10
  $region1: #{tpu_custom_call.1} parent=0
    #allocation2 [shape = 'u8[8192]{0}', space=vmem, size = 0x2000, scoped, tag = 'input window, operand 0, single buffered']
    #allocation3 [shape = 's32[1]{0}', space=sflag, size = 0x4, scoped, tag = 'scoped memory for tpu_custom_call.1']
    #allocation4 [shape = 's32[1]{0}', space=sflag, size = 0x4, scoped, tag = 'scoped memory for tpu_custom_call.1']
    #allocation5 [shape = 'u8[32768]{0}', space=vmem, size = 0x8000, scoped, tag = 'input window, operand 1, single buffered']
    #allocation6 [shape = 's32[1]{0}', space=sflag, size = 0x4, scoped, tag = 'scoped memory for tpu_custom_call.1']
    #allocation7 [shape = 'u8[262144]{0}', space=vmem, size = 0x40000, scoped, tag = 'input window, operand 3, single buffered']
    #allocation8 [shape = 'u8[65536]{0}', space=vmem, size = 0x10000, scoped, tag = 'input window, operand 5, single buffered']
    #allocation9 [shape = 's32[1]{0}', space=sflag, size = 0x4, scoped, tag = 'scoped memory for tpu_custom_call.1']
    #allocation10 [shape = 'u8[32768]{0}', space=vmem, size = 0x8000, scoped, tag = 'input window, operand 7, single buffered']
    #allocation11 [shape = 'u8[8192]{0}', space=vmem, size = 0x2000, scoped, tag = 'output window, operand 0, single buffered']
    %14 = vsyncpa [#allocation3], 0
    %15 = vsyncpa [#allocation6], 0
    %16 = vsyncpa [#allocation9], 0
    %17 = vsyncpa [#allocation4], 0
    // Predicated region
    $region2: #{tpu_custom_call.1} parent=1 // pred_check
      _
    $region3: #{tpu_custom_call.1} parent=1 // pred_check_branch
      %19 = sbr.rel (0) target = $region5
    $region4: #{tpu_custom_call.1} parent=1 // pred_region
      %s21 = ssub.s32 256, 256
      %22 = vsyncadd [#allocation3], %s21
      %s23 = sshll.u32 [#allocation2], 4
      %s24 = int_to_ptr.vmem [resolvable:$true] %s23
      %29 = dma.hbm_to_vmem [thread:$0]  %s0, 256, %s24, [#allocation3], 128, 128, 8
    $region5: #{tpu_custom_call.1} parent=1 // pred_fallthru
      _
    // Predicated region
    $region6: #{tpu_custom_call.1} parent=1 // pred_check
      _
    $region7: #{tpu_custom_call.1} parent=1 // pred_check_branch
      %31 = sbr.rel (0) target = $region9
    $region8: #{tpu_custom_call.1} parent=1 // pred_region
      %s33 = ssub.s32 1024, 1024
      %34 = vsyncadd [#allocation6], %s33
      %s35 = sshll.u32 [#allocation5], 4
      %s36 = int_to_ptr.vmem [resolvable:$true] %s35
      %41 = dma.hbm_to_vmem [thread:$0]  %s1, 1024, %s36, [#allocation6], 256, 256, 16
    $region9: #{tpu_custom_call.1} parent=1 // pred_fallthru
      _
    // Predicated region
    $region10: #{tpu_custom_call.1} parent=1 // pred_check
      _
    $region11: #{tpu_custom_call.1} parent=1 // pred_check_branch
      %43 = sbr.rel (0) target = $region13
    $region12: #{tpu_custom_call.1} parent=1 // pred_region
      _
    $region13: #{tpu_custom_call.1} parent=1 // pred_fallthru
      _
    // Predicated region
    $region14: #{tpu_custom_call.1} parent=1 // pred_check
      _
    $region15: #{tpu_custom_call.1} parent=1 // pred_check_branch
      %45 = sbr.rel (0) target = $region17
    $region16: #{tpu_custom_call.1} parent=1 // pred_region
      %s47 = ssub.s32 8192, 8192
      %48 = vsyncadd [#allocation6], %s47
      %s49 = sshll.u32 [#allocation7], 4
      %s50 = int_to_ptr.vmem [resolvable:$true] %s49
      %55 = dma.hbm_to_vmem [thread:$0]  %s3, 8192, %s50, [#allocation6], 128, 128, 8
    $region17: #{tpu_custom_call.1} parent=1 // pred_fallthru
      _
    // Predicated region
    $region18: #{tpu_custom_call.1} parent=1 // pred_check
      _
    $region19: #{tpu_custom_call.1} parent=1 // pred_check_branch
      %57 = sbr.rel (0) target = $region21
    $region20: #{tpu_custom_call.1} parent=1 // pred_region
      _
    $region21: #{tpu_custom_call.1} parent=1 // pred_fallthru
      _
    // Predicated region
    $region22: #{tpu_custom_call.1} parent=1 // pred_check
      _
    $region23: #{tpu_custom_call.1} parent=1 // pred_check_branch
      %59 = sbr.rel (0) target = $region25
    $region24: #{tpu_custom_call.1} parent=1 // pred_region
      %s61 = ssub.s32 2048, 2048
      %62 = vsyncadd [#allocation9], %s61
      %s63 = sshll.u32 [#allocation8], 4
      %s64 = int_to_ptr.vmem [resolvable:$true] %s63
      %69 = dma.hbm_to_vmem [thread:$0]  %s5, 2048, %s64, [#allocation9], 64, 64, 4
    $region25: #{tpu_custom_call.1} parent=1 // pred_fallthru
      _
    // Predicated region
    $region26: #{tpu_custom_call.1} parent=1 // pred_check
      _
    $region27: #{tpu_custom_call.1} parent=1 // pred_check_branch
      %71 = sbr.rel (0) target = $region29
    $region28: #{tpu_custom_call.1} parent=1 // pred_region
      _
    $region29: #{tpu_custom_call.1} parent=1 // pred_fallthru
      _
    // Predicated region
    $region30: #{tpu_custom_call.1} parent=1 // pred_check
      _
    $region31: #{tpu_custom_call.1} parent=1 // pred_check_branch
      %73 = sbr.rel (0) target = $region33
    $region32: #{tpu_custom_call.1} parent=1 // pred_region
      %s75 = ssub.s32 1024, 1024
      %76 = vsyncadd [#allocation9], %s75
      %s77 = sshll.u32 [#allocation10], 4
      %s78 = int_to_ptr.vmem [resolvable:$true] %s77
      %83 = dma.hbm_to_vmem [thread:$0]  %s7, 1024, %s78, [#allocation9], 64, 64, 4
    $region33: #{tpu_custom_call.1} parent=1 // pred_fallthru
      _
    // Predicated region
    $region34: #{tpu_custom_call.1} parent=1 // pred_check
      _
    $region35: #{tpu_custom_call.1} parent=1 // pred_check_branch
      %85 = sbr.rel (0) target = $region37
    $region36: #{tpu_custom_call.1} parent=1 // pred_region
      _
    $region37: #{tpu_custom_call.1} parent=1 // pred_fallthru
      _
    // Predicated region
    $region38: #{tpu_custom_call.1} parent=1 // pred_check
      _
    $region39: #{tpu_custom_call.1} parent=1 // pred_check_branch
      %87 = sbr.rel (0) target = $region41
    $region40: #{tpu_custom_call.1} parent=1 // pred_region
      %88 = dma.done [#allocation3], 256
    $region41: #{tpu_custom_call.1} parent=1 // pred_fallthru
      _
    // Predicated region
    $region42: #{tpu_custom_call.1} parent=1 // pred_check
      _
    $region43: #{tpu_custom_call.1} parent=1 // pred_check_branch
      %90 = sbr.rel (0) target = $region45
    $region44: #{tpu_custom_call.1} parent=1 // pred_region
      %91 = dma.done [#allocation6], 1024
    $region45: #{tpu_custom_call.1} parent=1 // pred_fallthru
      _
    // Predicated region
    $region46: #{tpu_custom_call.1} parent=1 // pred_check
      _
    $region47: #{tpu_custom_call.1} parent=1 // pred_check_branch
      %93 = sbr.rel (0) target = $region49
    $region48: #{tpu_custom_call.1} parent=1 // pred_region
      %94 = dma.done [#allocation6], 8192
    $region49: #{tpu_custom_call.1} parent=1 // pred_fallthru
      _
    // Predicated region
    $region50: #{tpu_custom_call.1} parent=1 // pred_check
      _
    $region51: #{tpu_custom_call.1} parent=1 // pred_check_branch
      %96 = sbr.rel (0) target = $region53
    $region52: #{tpu_custom_call.1} parent=1 // pred_region
      %97 = dma.done [#allocation9], 2048
    $region53: #{tpu_custom_call.1} parent=1 // pred_fallthru
      _
    // Predicated region
    $region54: #{tpu_custom_call.1} parent=1 // pred_check
      _
    $region55: #{tpu_custom_call.1} parent=1 // pred_check_branch
      %99 = sbr.rel (0) target = $region57
    $region56: #{tpu_custom_call.1} parent=1 // pred_region
      %100 = dma.done [#allocation9], 1024
    $region57: #{tpu_custom_call.1} parent=1 // pred_fallthru
      _
    %v102 = vld [vmem:[#allocation2] sm:$0xff]
    %v103 = vld [vmem:[#allocation2 + $0x8] sm:$0xff]
    %v104 = vpack.c.bf16 %v103, %v102
    %v105 = vld [vmem:[#allocation5] sm:$0xff]
    %v106 = vld [vmem:[#allocation5 + $0x8] sm:$0xff]
    %v107 = vld [vmem:[#allocation5 + $0x10] sm:$0xff]
    %v108 = vld [vmem:[#allocation5 + $0x18] sm:$0xff]
    %v109 = vld [vmem:[#allocation5 + $0x20] sm:$0xff]
    %v110 = vld [vmem:[#allocation5 + $0x28] sm:$0xff]
    %v111 = vld [vmem:[#allocation5 + $0x30] sm:$0xff]
    %v112 = vld [vmem:[#allocation5 + $0x38] sm:$0xff]
    %v113 = vld [vmem:[%s2] sm:$0xf]
    %v115 = vlaneseq
    %v116 = vshrl.u32 %v115, 7
    %v117 = vsub.s32 0, %v116
    %v118 = vrot.slane %v113, %v117
    %v119 = vlaneseq
    %v120 = vshrl.u32 %v119, 7
    %v121 = vsub.s32 1, %v120
    %v122 = vrot.slane %v113, %v121
    %v123 = vlaneseq
    %v124 = vshrl.u32 %v123, 7
    %v125 = vsub.s32 2, %v124
    %v126 = vrot.slane %v113, %v125
    %v127 = vlaneseq
    %v128 = vshrl.u32 %v127, 7
    %v129 = vsub.s32 3, %v128
    %v130 = vrot.slane %v113, %v129
    %v143 = vunpack.c.l.b16 %v105
    %v144 = vunpack.c.h.b16 %v105
    %v145 = vunpack.c.l.b16 %v106
    %v146 = vunpack.c.h.b16 %v106
    %v147 = vunpack.c.l.b16 %v107
    %v148 = vunpack.c.h.b16 %v107
    %v149 = vunpack.c.l.b16 %v108
    %v150 = vunpack.c.h.b16 %v108
    %v151 = vunpack.c.l.b16 %v109
    %v152 = vunpack.c.h.b16 %v109
    %v153 = vunpack.c.l.b16 %v110
    %v154 = vunpack.c.h.b16 %v110
    %v155 = vunpack.c.l.b16 %v111
    %v156 = vunpack.c.h.b16 %v111
    %v157 = vunpack.c.l.b16 %v112
    %v158 = vunpack.c.h.b16 %v112
    %v159 = vpack.c.b16 %v147, %v143
    %v160 = vpack.c.b16 %v148, %v144
    %v161 = vpack.c.b16 %v149, %v145
    %v162 = vpack.c.b16 %v150, %v146
    %v163 = vpack.c.b16 %v155, %v151
    %v164 = vpack.c.b16 %v156, %v152
    %v165 = vpack.c.b16 %v157, %v153
    %v166 = vpack.c.b16 %v158, %v154
    %vm175 = vcmask 261120
    %v177 = vsel %vm175, %v104, 0
    %179 = vmatprep.subr.bf16.mxu0 %v160
    %180 = vmatpush1.bf16.msra.mxu0 %v159
    %181 = vmatprep.subr.bf16.mxu0 %v164
    %182 = vmatpush1.bf16.msra.mxu0 %v163
    %183 = vmatprep.subr.bf16.mxu0 0
    %184 = vmatpush1.bf16.msra.mxu0 0
    %185 = vmatprep.subr.bf16.mxu0 0
    %186 = vmatpush1.bf16.msra.mxu0 0
    %187 = vmatprep.subr.bf16.mxu0 0
    %188 = vmatpush1.bf16.msra.mxu0 0
    %189 = vmatprep.subr.bf16.mxu0 0
    %190 = vmatpush1.bf16.msra.mxu0 0
    %191 = vmatprep.subr.bf16.mxu0 0
    %192 = vmatpush1.bf16.msra.mxu0 0
    %193 = vmatprep.subr.bf16.mxu0 0
    %194 = vmatpush1.bf16.msra.mxu0 0
    %195 = vmatprep.subr.bf16.mxu0 0
    %196 = vmatpush1.bf16.msra.mxu0 0
    %197 = vmatprep.subr.bf16.mxu0 0
    %198 = vmatpush1.bf16.msra.mxu0 0
    %199 = vmatprep.subr.bf16.mxu0 0
    %200 = vmatpush1.bf16.msra.mxu0 0
    %201 = vmatprep.subr.bf16.mxu0 0
    %202 = vmatpush1.bf16.msra.mxu0 0
    %203 = vmatprep.subr.bf16.mxu0 0
    %204 = vmatpush1.bf16.msra.mxu0 0
    %205 = vmatprep.subr.bf16.mxu0 0
    %206 = vmatpush1.bf16.msra.mxu0 0
    %207 = vmatprep.subr.bf16.mxu0 0
    %208 = vmatpush1.bf16.msra.mxu0 0
    %209 = vmatprep.subr.bf16.mxu0 0
    %210 = vmatpush1.bf16.msra.mxu0 0
    %211 = vmatprep.mubr.bf16.mxu0 0
    %212 = vmatmul.mubr.bf16.gmra.mrb[0].mxu0 %v177
    %v213 = vpop.f32.mrb[0].mxu0
    %v214 = vadd.f32 %v118, %v213
    %v215 = vpop.f32.mrb[0].mxu0
    %v216 = vadd.f32 %v122, %v215
    %v217 = vpop.f32.mrb[0].mxu0
    %v218 = vadd.f32 %v118, %v217
    %v219 = vpop.f32.mrb[0].mxu0
    %v220 = vadd.f32 %v122, %v219
    %221 = vdwg.mxu0
    %222 = vmatprep.subr.bf16.mxu0 %v162
    %223 = vmatpush1.bf16.msra.mxu0 %v161
    %224 = vmatprep.subr.bf16.mxu0 %v166
    %225 = vmatpush1.bf16.msra.mxu0 %v165
    %226 = vmatprep.subr.bf16.mxu0 0
    %227 = vmatpush1.bf16.msra.mxu0 0
    %228 = vmatprep.subr.bf16.mxu0 0
    %229 = vmatpush1.bf16.msra.mxu0 0
    %230 = vmatprep.subr.bf16.mxu0 0
    %231 = vmatpush1.bf16.msra.mxu0 0
    %232 = vmatprep.subr.bf16.mxu0 0
    %233 = vmatpush1.bf16.msra.mxu0 0
    %234 = vmatprep.subr.bf16.mxu0 0
    %235 = vmatpush1.bf16.msra.mxu0 0
    %236 = vmatprep.subr.bf16.mxu0 0
    %237 = vmatpush1.bf16.msra.mxu0 0
    %238 = vmatprep.subr.bf16.mxu0 0
    %239 = vmatpush1.bf16.msra.mxu0 0
    %240 = vmatprep.subr.bf16.mxu0 0
    %241 = vmatpush1.bf16.msra.mxu0 0
    %242 = vmatprep.subr.bf16.mxu0 0
    %243 = vmatpush1.bf16.msra.mxu0 0
    %244 = vmatprep.subr.bf16.mxu0 0
    %245 = vmatpush1.bf16.msra.mxu0 0
    %246 = vmatprep.subr.bf16.mxu0 0
    %247 = vmatpush1.bf16.msra.mxu0 0
    %248 = vmatprep.subr.bf16.mxu0 0
    %249 = vmatpush1.bf16.msra.mxu0 0
    %250 = vmatprep.subr.bf16.mxu0 0
    %251 = vmatpush1.bf16.msra.mxu0 0
    %252 = vmatprep.subr.bf16.mxu0 0
    %253 = vmatpush1.bf16.msra.mxu0 0
    %254 = vmatprep.mubr.bf16.mxu0 0
    %255 = vmatmul.mubr.bf16.gmra.mrb[0].mxu0 %v177
    %v256 = vpop.f32.mrb[0].mxu0
    %v257 = vadd.f32 %v126, %v256
    %v258 = vpop.f32.mrb[0].mxu0
    %v259 = vadd.f32 %v130, %v258
    %v260 = vpop.f32.mrb[0].mxu0
    %v261 = vadd.f32 %v126, %v260
    %v262 = vpop.f32.mrb[0].mxu0
    %v263 = vadd.f32 %v130, %v262
    %264 = vdwg.mxu0
    %v265 = vmax.f32 %v214, 0.0
    %v266 = vmax.f32 %v216, 0.0
    %v267 = vmax.f32 %v257, 0.0
    %v268 = vmax.f32 %v259, 0.0
    %v269 = vmax.f32 %v218, 0.0
    %v270 = vmax.f32 %v220, 0.0
    %v271 = vmax.f32 %v261, 0.0
    %v272 = vmax.f32 %v263, 0.0
    %v273 = vpack.c.bf16 %v269, %v265
    %v274 = vpack.c.bf16 %v270, %v266
    %v275 = vpack.c.bf16 %v271, %v267
    %v276 = vpack.c.bf16 %v272, %v268
    %v277 = vld [vmem:[#allocation7] sm:$0xff]
    %v278 = vld [vmem:[#allocation7 + $0x8] sm:$0xff]
    %v279 = vld [vmem:[#allocation7 + $0x10] sm:$0xff]
    %v280 = vld [vmem:[#allocation7 + $0x18] sm:$0xff]
    %v281 = vld [vmem:[#allocation7 + $0x20] sm:$0xff]
    %v282 = vld [vmem:[#allocation7 + $0x28] sm:$0xff]
    %v283 = vld [vmem:[#allocation7 + $0x30] sm:$0xff]
    %v284 = vld [vmem:[#allocation7 + $0x38] sm:$0xff]
    %v285 = vld [vmem:[#allocation7 + $0x40] sm:$0xff]
    %v286 = vld [vmem:[#allocation7 + $0x48] sm:$0xff]
    %v287 = vld [vmem:[#allocation7 + $0x50] sm:$0xff]
    %v288 = vld [vmem:[#allocation7 + $0x58] sm:$0xff]
    %v289 = vld [vmem:[#allocation7 + $0x60] sm:$0xff]
    %v290 = vld [vmem:[#allocation7 + $0x68] sm:$0xff]
    %v291 = vld [vmem:[#allocation7 + $0x70] sm:$0xff]
    %v292 = vld [vmem:[#allocation7 + $0x78] sm:$0xff]
    %v293 = vld [vmem:[#allocation7 + $0x80] sm:$0xff]
    %v294 = vld [vmem:[#allocation7 + $0x88] sm:$0xff]
    %v295 = vld [vmem:[#allocation7 + $0x90] sm:$0xff]
    %v296 = vld [vmem:[#allocation7 + $0x98] sm:$0xff]
    %v297 = vld [vmem:[#allocation7 + $0xa0] sm:$0xff]
    %v298 = vld [vmem:[#allocation7 + $0xa8] sm:$0xff]
    %v299 = vld [vmem:[#allocation7 + $0xb0] sm:$0xff]
    %v300 = vld [vmem:[#allocation7 + $0xb8] sm:$0xff]
    %v301 = vld [vmem:[#allocation7 + $0xc0] sm:$0xff]
    %v302 = vld [vmem:[#allocation7 + $0xc8] sm:$0xff]
    %v303 = vld [vmem:[#allocation7 + $0xd0] sm:$0xff]
    %v304 = vld [vmem:[#allocation7 + $0xd8] sm:$0xff]
    %v305 = vld [vmem:[#allocation7 + $0xe0] sm:$0xff]
    %v306 = vld [vmem:[#allocation7 + $0xe8] sm:$0xff]
    %v307 = vld [vmem:[#allocation7 + $0xf0] sm:$0xff]
    %v308 = vld [vmem:[#allocation7 + $0xf8] sm:$0xff]
    %v309 = vld [vmem:[#allocation7 + $0x100] sm:$0xff]
    %v310 = vld [vmem:[#allocation7 + $0x108] sm:$0xff]
    %v311 = vld [vmem:[#allocation7 + $0x110] sm:$0xff]
    %v312 = vld [vmem:[#allocation7 + $0x118] sm:$0xff]
    %v313 = vld [vmem:[#allocation7 + $0x120] sm:$0xff]
    %v314 = vld [vmem:[#allocation7 + $0x128] sm:$0xff]
    %v315 = vld [vmem:[#allocation7 + $0x130] sm:$0xff]
    %v316 = vld [vmem:[#allocation7 + $0x138] sm:$0xff]
    %v317 = vld [vmem:[#allocation7 + $0x140] sm:$0xff]
    %v318 = vld [vmem:[#allocation7 + $0x148] sm:$0xff]
    %v319 = vld [vmem:[#allocation7 + $0x150] sm:$0xff]
    %v320 = vld [vmem:[#allocation7 + $0x158] sm:$0xff]
    %v321 = vld [vmem:[#allocation7 + $0x160] sm:$0xff]
    %v322 = vld [vmem:[#allocation7 + $0x168] sm:$0xff]
    %v323 = vld [vmem:[#allocation7 + $0x170] sm:$0xff]
    %v324 = vld [vmem:[#allocation7 + $0x178] sm:$0xff]
    %v325 = vld [vmem:[#allocation7 + $0x180] sm:$0xff]
    %v326 = vld [vmem:[#allocation7 + $0x188] sm:$0xff]
    %v327 = vld [vmem:[#allocation7 + $0x190] sm:$0xff]
    %v328 = vld [vmem:[#allocation7 + $0x198] sm:$0xff]
    %v329 = vld [vmem:[#allocation7 + $0x1a0] sm:$0xff]
    %v330 = vld [vmem:[#allocation7 + $0x1a8] sm:$0xff]
    %v331 = vld [vmem:[#allocation7 + $0x1b0] sm:$0xff]
    %v332 = vld [vmem:[#allocation7 + $0x1b8] sm:$0xff]
    %v333 = vld [vmem:[#allocation7 + $0x1c0] sm:$0xff]
    %v334 = vld [vmem:[#allocation7 + $0x1c8] sm:$0xff]
    %v335 = vld [vmem:[#allocation7 + $0x1d0] sm:$0xff]
    %v336 = vld [vmem:[#allocation7 + $0x1d8] sm:$0xff]
    %v337 = vld [vmem:[#allocation7 + $0x1e0] sm:$0xff]
    %v338 = vld [vmem:[#allocation7 + $0x1e8] sm:$0xff]
    %v339 = vld [vmem:[#allocation7 + $0x1f0] sm:$0xff]
    %v340 = vld [vmem:[#allocation7 + $0x1f8] sm:$0xff]
    %v341 = vld [vmem:[%s4] sm:$0x3]
    %v343 = vlaneseq
    %v344 = vshrl.u32 %v343, 7
    %v345 = vsub.s32 0, %v344
    %v346 = vrot.slane %v341, %v345
    %v347 = vlaneseq
    %v348 = vshrl.u32 %v347, 7
    %v349 = vsub.s32 1, %v348
    %v350 = vrot.slane %v341, %v349
    %v417 = vunpack.c.l.b16 %v277
    %v418 = vunpack.c.h.b16 %v277
    %v419 = vunpack.c.l.b16 %v278
    %v420 = vunpack.c.h.b16 %v278
    %v421 = vunpack.c.l.b16 %v279
    %v422 = vunpack.c.h.b16 %v279
    %v423 = vunpack.c.l.b16 %v280
    %v424 = vunpack.c.h.b16 %v280
    %v425 = vunpack.c.l.b16 %v281
    %v426 = vunpack.c.h.b16 %v281
    %v427 = vunpack.c.l.b16 %v282
    %v428 = vunpack.c.h.b16 %v282
    %v429 = vunpack.c.l.b16 %v283
    %v430 = vunpack.c.h.b16 %v283
    %v431 = vunpack.c.l.b16 %v284
    %v432 = vunpack.c.h.b16 %v284
    %v433 = vunpack.c.l.b16 %v285
    %v434 = vunpack.c.h.b16 %v285
    %v435 = vunpack.c.l.b16 %v286
    %v436 = vunpack.c.h.b16 %v286
    %v437 = vunpack.c.l.b16 %v287
    %v438 = vunpack.c.h.b16 %v287
    %v439 = vunpack.c.l.b16 %v288
    %v440 = vunpack.c.h.b16 %v288
    %v441 = vunpack.c.l.b16 %v289
    %v442 = vunpack.c.h.b16 %v289
    %v443 = vunpack.c.l.b16 %v290
    %v444 = vunpack.c.h.b16 %v290
    %v445 = vunpack.c.l.b16 %v291
    %v446 = vunpack.c.h.b16 %v291
    %v447 = vunpack.c.l.b16 %v292
    %v448 = vunpack.c.h.b16 %v292
    %v449 = vunpack.c.l.b16 %v293
    %v450 = vunpack.c.h.b16 %v293
    %v451 = vunpack.c.l.b16 %v294
    %v452 = vunpack.c.h.b16 %v294
    %v453 = vunpack.c.l.b16 %v295
    %v454 = vunpack.c.h.b16 %v295
    %v455 = vunpack.c.l.b16 %v296
    %v456 = vunpack.c.h.b16 %v296
    %v457 = vunpack.c.l.b16 %v297
    %v458 = vunpack.c.h.b16 %v297
    %v459 = vunpack.c.l.b16 %v298
    %v460 = vunpack.c.h.b16 %v298
    %v461 = vunpack.c.l.b16 %v299
    %v462 = vunpack.c.h.b16 %v299
    %v463 = vunpack.c.l.b16 %v300
    %v464 = vunpack.c.h.b16 %v300
    %v465 = vunpack.c.l.b16 %v301
    %v466 = vunpack.c.h.b16 %v301
    %v467 = vunpack.c.l.b16 %v302
    %v468 = vunpack.c.h.b16 %v302
    %v469 = vunpack.c.l.b16 %v303
    %v470 = vunpack.c.h.b16 %v303
    %v471 = vunpack.c.l.b16 %v304
    %v472 = vunpack.c.h.b16 %v304
    %v473 = vunpack.c.l.b16 %v305
    %v474 = vunpack.c.h.b16 %v305
    %v475 = vunpack.c.l.b16 %v306
    %v476 = vunpack.c.h.b16 %v306
    %v477 = vunpack.c.l.b16 %v307
    %v478 = vunpack.c.h.b16 %v307
    %v479 = vunpack.c.l.b16 %v308
    %v480 = vunpack.c.h.b16 %v308
    %v481 = vunpack.c.l.b16 %v309
    %v482 = vunpack.c.h.b16 %v309
    %v483 = vunpack.c.l.b16 %v310
    %v484 = vunpack.c.h.b16 %v310
    %v485 = vunpack.c.l.b16 %v311
    %v486 = vunpack.c.h.b16 %v311
    %v487 = vunpack.c.l.b16 %v312
    %v488 = vunpack.c.h.b16 %v312
    %v489 = vunpack.c.l.b16 %v313
    %v490 = vunpack.c.h.b16 %v313
    %v491 = vunpack.c.l.b16 %v314
    %v492 = vunpack.c.h.b16 %v314
    %v493 = vunpack.c.l.b16 %v315
    %v494 = vunpack.c.h.b16 %v315
    %v495 = vunpack.c.l.b16 %v316
    %v496 = vunpack.c.h.b16 %v316
    %v497 = vunpack.c.l.b16 %v317
    %v498 = vunpack.c.h.b16 %v317
    %v499 = vunpack.c.l.b16 %v318
    %v500 = vunpack.c.h.b16 %v318
    %v501 = vunpack.c.l.b16 %v319
    %v502 = vunpack.c.h.b16 %v319
    %v503 = vunpack.c.l.b16 %v320
    %v504 = vunpack.c.h.b16 %v320
    %v505 = vunpack.c.l.b16 %v321
    %v506 = vunpack.c.h.b16 %v321
    %v507 = vunpack.c.l.b16 %v322
    %v508 = vunpack.c.h.b16 %v322
    %v509 = vunpack.c.l.b16 %v323
    %v510 = vunpack.c.h.b16 %v323
    %v511 = vunpack.c.l.b16 %v324
    %v512 = vunpack.c.h.b16 %v324
    %v513 = vunpack.c.l.b16 %v325
    %v514 = vunpack.c.h.b16 %v325
    %v515 = vunpack.c.l.b16 %v326
    %v516 = vunpack.c.h.b16 %v326
    %v517 = vunpack.c.l.b16 %v327
    %v518 = vunpack.c.h.b16 %v327
    %v519 = vunpack.c.l.b16 %v328
    %v520 = vunpack.c.h.b16 %v328
    %v521 = vunpack.c.l.b16 %v329
    %v522 = vunpack.c.h.b16 %v329
    %v523 = vunpack.c.l.b16 %v330
    %v524 = vunpack.c.h.b16 %v330
    %v525 = vunpack.c.l.b16 %v331
    %v526 = vunpack.c.h.b16 %v331
    %v527 = vunpack.c.l.b16 %v332
    %v528 = vunpack.c.h.b16 %v332
    %v529 = vunpack.c.l.b16 %v333
    %v530 = vunpack.c.h.b16 %v333
    %v531 = vunpack.c.l.b16 %v334
    %v532 = vunpack.c.h.b16 %v334
    %v533 = vunpack.c.l.b16 %v335
    %v534 = vunpack.c.h.b16 %v335
    %v535 = vunpack.c.l.b16 %v336
    %v536 = vunpack.c.h.b16 %v336
    %v537 = vunpack.c.l.b16 %v337
    %v538 = vunpack.c.h.b16 %v337
    %v539 = vunpack.c.l.b16 %v338
    %v540 = vunpack.c.h.b16 %v338
    %v541 = vunpack.c.l.b16 %v339
    %v542 = vunpack.c.h.b16 %v339
    %v543 = vunpack.c.l.b16 %v340
    %v544 = vunpack.c.h.b16 %v340
    %v545 = vpack.c.b16 %v419, %v417
    %v546 = vpack.c.b16 %v420, %v418
    %v547 = vpack.c.b16 %v423, %v421
    %v548 = vpack.c.b16 %v424, %v422
    %v549 = vpack.c.b16 %v427, %v425
    %v550 = vpack.c.b16 %v428, %v426
    %v551 = vpack.c.b16 %v431, %v429
    %v552 = vpack.c.b16 %v432, %v430
    %v553 = vpack.c.b16 %v435, %v433
    %v554 = vpack.c.b16 %v436, %v434
    %v555 = vpack.c.b16 %v439, %v437
    %v556 = vpack.c.b16 %v440, %v438
    %v557 = vpack.c.b16 %v443, %v441
    %v558 = vpack.c.b16 %v444, %v442
    %v559 = vpack.c.b16 %v447, %v445
    %v560 = vpack.c.b16 %v448, %v446
    %v561 = vpack.c.b16 %v451, %v449
    %v562 = vpack.c.b16 %v452, %v450
    %v563 = vpack.c.b16 %v455, %v453
    %v564 = vpack.c.b16 %v456, %v454
    %v565 = vpack.c.b16 %v459, %v457
    %v566 = vpack.c.b16 %v460, %v458
    %v567 = vpack.c.b16 %v463, %v461
    %v568 = vpack.c.b16 %v464, %v462
    %v569 = vpack.c.b16 %v467, %v465
    %v570 = vpack.c.b16 %v468, %v466
    %v571 = vpack.c.b16 %v471, %v469
    %v572 = vpack.c.b16 %v472, %v470
    %v573 = vpack.c.b16 %v475, %v473
    %v574 = vpack.c.b16 %v476, %v474
    %v575 = vpack.c.b16 %v479, %v477
    %v576 = vpack.c.b16 %v480, %v478
    %v577 = vpack.c.b16 %v483, %v481
    %v578 = vpack.c.b16 %v484, %v482
    %v579 = vpack.c.b16 %v487, %v485
    %v580 = vpack.c.b16 %v488, %v486
    %v581 = vpack.c.b16 %v491, %v489
    %v582 = vpack.c.b16 %v492, %v490
    %v583 = vpack.c.b16 %v495, %v493
    %v584 = vpack.c.b16 %v496, %v494
    %v585 = vpack.c.b16 %v499, %v497
    %v586 = vpack.c.b16 %v500, %v498
    %v587 = vpack.c.b16 %v503, %v501
    %v588 = vpack.c.b16 %v504, %v502
    %v589 = vpack.c.b16 %v507, %v505
    %v590 = vpack.c.b16 %v508, %v506
    %v591 = vpack.c.b16 %v511, %v509
    %v592 = vpack.c.b16 %v512, %v510
    %v593 = vpack.c.b16 %v515, %v513
    %v594 = vpack.c.b16 %v516, %v514
    %v595 = vpack.c.b16 %v519, %v517
    %v596 = vpack.c.b16 %v520, %v518
    %v597 = vpack.c.b16 %v523, %v521
    %v598 = vpack.c.b16 %v524, %v522
    %v599 = vpack.c.b16 %v527, %v525
    %v600 = vpack.c.b16 %v528, %v526
    %v601 = vpack.c.b16 %v531, %v529
    %v602 = vpack.c.b16 %v532, %v530
    %v603 = vpack.c.b16 %v535, %v533
    %v604 = vpack.c.b16 %v536, %v534
    %v605 = vpack.c.b16 %v539, %v537
    %v606 = vpack.c.b16 %v540, %v538
    %v607 = vpack.c.b16 %v543, %v541
    %v608 = vpack.c.b16 %v544, %v542
    %673 = vmatprep.subr.bf16.mxu0 %v546
    %674 = vmatpush1.bf16.msra.mxu0 %v545
    %675 = vmatprep.subr.bf16.mxu0 %v548
    %676 = vmatpush1.bf16.msra.mxu0 %v547
    %677 = vmatprep.subr.bf16.mxu0 %v550
    %678 = vmatpush1.bf16.msra.mxu0 %v549
    %679 = vmatprep.subr.bf16.mxu0 %v552
    %680 = vmatpush1.bf16.msra.mxu0 %v551
    %681 = vmatprep.subr.bf16.mxu0 %v554
    %682 = vmatpush1.bf16.msra.mxu0 %v553
    %683 = vmatprep.subr.bf16.mxu0 %v556
    %684 = vmatpush1.bf16.msra.mxu0 %v555
    %685 = vmatprep.subr.bf16.mxu0 %v558
    %686 = vmatpush1.bf16.msra.mxu0 %v557
    %687 = vmatprep.subr.bf16.mxu0 %v560
    %688 = vmatpush1.bf16.msra.mxu0 %v559
    %689 = vmatprep.subr.bf16.mxu0 %v562
    %690 = vmatpush1.bf16.msra.mxu0 %v561
    %691 = vmatprep.subr.bf16.mxu0 %v564
    %692 = vmatpush1.bf16.msra.mxu0 %v563
    %693 = vmatprep.subr.bf16.mxu0 %v566
    %694 = vmatpush1.bf16.msra.mxu0 %v565
    %695 = vmatprep.subr.bf16.mxu0 %v568
    %696 = vmatpush1.bf16.msra.mxu0 %v567
    %697 = vmatprep.subr.bf16.mxu0 %v570
    %698 = vmatpush1.bf16.msra.mxu0 %v569
    %699 = vmatprep.subr.bf16.mxu0 %v572
    %700 = vmatpush1.bf16.msra.mxu0 %v571
    %701 = vmatprep.subr.bf16.mxu0 %v574
    %702 = vmatpush1.bf16.msra.mxu0 %v573
    %703 = vmatprep.subr.bf16.mxu0 %v576
    %704 = vmatpush1.bf16.msra.mxu0 %v575
    %705 = vmatprep.mubr.bf16.mxu0 %v274
    %706 = vmatmul.mubr.bf16.gmra.mrb[0].mxu0 %v273
    %v707 = vpop.f32.mrb[0].mxu0
    %v708 = vadd.f32 %v346, %v707
    %v709 = vpop.f32.mrb[0].mxu0
    %v710 = vadd.f32 %v350, %v709
    %v711 = vpop.f32.mrb[0].mxu0
    %v712 = vadd.f32 %v346, %v711
    %v713 = vpop.f32.mrb[0].mxu0
    %v714 = vadd.f32 %v350, %v713
    %715 = vdwg.mxu0
    %716 = vmatprep.subr.bf16.mxu0 %v578
    %717 = vmatpush1.bf16.msra.mxu0 %v577
    %718 = vmatprep.subr.bf16.mxu0 %v580
    %719 = vmatpush1.bf16.msra.mxu0 %v579
    %720 = vmatprep.subr.bf16.mxu0 %v582
    %721 = vmatpush1.bf16.msra.mxu0 %v581
    %722 = vmatprep.subr.bf16.mxu0 %v584
    %723 = vmatpush1.bf16.msra.mxu0 %v583
    %724 = vmatprep.subr.bf16.mxu0 %v586
    %725 = vmatpush1.bf16.msra.mxu0 %v585
    %726 = vmatprep.subr.bf16.mxu0 %v588
    %727 = vmatpush1.bf16.msra.mxu0 %v587
    %728 = vmatprep.subr.bf16.mxu0 %v590
    %729 = vmatpush1.bf16.msra.mxu0 %v589
    %730 = vmatprep.subr.bf16.mxu0 %v592
    %731 = vmatpush1.bf16.msra.mxu0 %v591
    %732 = vmatprep.subr.bf16.mxu0 %v594
    %733 = vmatpush1.bf16.msra.mxu0 %v593
    %734 = vmatprep.subr.bf16.mxu0 %v596
    %735 = vmatpush1.bf16.msra.mxu0 %v595
    %736 = vmatprep.subr.bf16.mxu0 %v598
    %737 = vmatpush1.bf16.msra.mxu0 %v597
    %738 = vmatprep.subr.bf16.mxu0 %v600
    %739 = vmatpush1.bf16.msra.mxu0 %v599
    %740 = vmatprep.subr.bf16.mxu0 %v602
    %741 = vmatpush1.bf16.msra.mxu0 %v601
    %742 = vmatprep.subr.bf16.mxu0 %v604
    %743 = vmatpush1.bf16.msra.mxu0 %v603
    %744 = vmatprep.subr.bf16.mxu0 %v606
    %745 = vmatpush1.bf16.msra.mxu0 %v605
    %746 = vmatprep.subr.bf16.mxu0 %v608
    %747 = vmatpush1.bf16.msra.mxu0 %v607
    %748 = vmatprep.mubr.bf16.mxu0 %v276
    %749 = vmatmul.mubr.bf16.gmra.mrb[0].mxu0 %v275
    %v750 = vpop.f32.mrb[0].mxu0
    %v751 = vadd.f32 %v708, %v750
    %v752 = vpop.f32.mrb[0].mxu0
    %v753 = vadd.f32 %v710, %v752
    %v754 = vpop.f32.mrb[0].mxu0
    %v755 = vadd.f32 %v712, %v754
    %v756 = vpop.f32.mrb[0].mxu0
    %v757 = vadd.f32 %v714, %v756
    %758 = vdwg.mxu0
    %v759 = vmax.f32 %v751, 0.0
    %v760 = vmax.f32 %v753, 0.0
    %v761 = vmax.f32 %v755, 0.0
    %v762 = vmax.f32 %v757, 0.0
    %v763 = vpack.c.bf16 %v761, %v759
    %v764 = vpack.c.bf16 %v762, %v760
    %v765 = vld [vmem:[#allocation8] sm:$0xf]
    %v766 = vld [vmem:[#allocation8 + $0x4] sm:$0xf]
    %v767 = vld [vmem:[#allocation8 + $0x8] sm:$0xf]
    %v768 = vld [vmem:[#allocation8 + $0xc] sm:$0xf]
    %v769 = vld [vmem:[#allocation8 + $0x10] sm:$0xf]
    %v770 = vld [vmem:[#allocation8 + $0x14] sm:$0xf]
    %v771 = vld [vmem:[#allocation8 + $0x18] sm:$0xf]
    %v772 = vld [vmem:[#allocation8 + $0x1c] sm:$0xf]
    %v773 = vld [vmem:[#allocation8 + $0x20] sm:$0xf]
    %v774 = vld [vmem:[#allocation8 + $0x24] sm:$0xf]
    %v775 = vld [vmem:[#allocation8 + $0x28] sm:$0xf]
    %v776 = vld [vmem:[#allocation8 + $0x2c] sm:$0xf]
    %v777 = vld [vmem:[#allocation8 + $0x30] sm:$0xf]
    %v778 = vld [vmem:[#allocation8 + $0x34] sm:$0xf]
    %v779 = vld [vmem:[#allocation8 + $0x38] sm:$0xf]
    %v780 = vld [vmem:[#allocation8 + $0x3c] sm:$0xf]
    %v781 = vld [vmem:[#allocation8 + $0x40] sm:$0xf]
    %v782 = vld [vmem:[#allocation8 + $0x44] sm:$0xf]
    %v783 = vld [vmem:[#allocation8 + $0x48] sm:$0xf]
    %v784 = vld [vmem:[#allocation8 + $0x4c] sm:$0xf]
    %v785 = vld [vmem:[#allocation8 + $0x50] sm:$0xf]
    %v786 = vld [vmem:[#allocation8 + $0x54] sm:$0xf]
    %v787 = vld [vmem:[#allocation8 + $0x58] sm:$0xf]
    %v788 = vld [vmem:[#allocation8 + $0x5c] sm:$0xf]
    %v789 = vld [vmem:[#allocation8 + $0x60] sm:$0xf]
    %v790 = vld [vmem:[#allocation8 + $0x64] sm:$0xf]
    %v791 = vld [vmem:[#allocation8 + $0x68] sm:$0xf]
    %v792 = vld [vmem:[#allocation8 + $0x6c] sm:$0xf]
    %v793 = vld [vmem:[#allocation8 + $0x70] sm:$0xf]
    %v794 = vld [vmem:[#allocation8 + $0x74] sm:$0xf]
    %v795 = vld [vmem:[#allocation8 + $0x78] sm:$0xf]
    %v796 = vld [vmem:[#allocation8 + $0x7c] sm:$0xf]
    %v797 = vld [vmem:[%s6] sm:$0x1]
    %v799 = vlaneseq
    %v800 = vshrl.u32 %v799, 7
    %v801 = vsub.s32 0, %v800
    %v802 = vrot.slane %v797, %v801
    %v836 = vunpack.c.l.b16 %v765
    %v837 = vunpack.c.l.b16 %v766
    %v838 = vunpack.c.l.b16 %v767
    %v839 = vunpack.c.l.b16 %v768
    %v840 = vunpack.c.l.b16 %v769
    %v841 = vunpack.c.l.b16 %v770
    %v842 = vunpack.c.l.b16 %v771
    %v843 = vunpack.c.l.b16 %v772
    %v844 = vunpack.c.l.b16 %v773
    %v845 = vunpack.c.l.b16 %v774
    %v846 = vunpack.c.l.b16 %v775
    %v847 = vunpack.c.l.b16 %v776
    %v848 = vunpack.c.l.b16 %v777
    %v849 = vunpack.c.l.b16 %v778
    %v850 = vunpack.c.l.b16 %v779
    %v851 = vunpack.c.l.b16 %v780
    %v852 = vunpack.c.l.b16 %v781
    %v853 = vunpack.c.l.b16 %v782
    %v854 = vunpack.c.l.b16 %v783
    %v855 = vunpack.c.l.b16 %v784
    %v856 = vunpack.c.l.b16 %v785
    %v857 = vunpack.c.l.b16 %v786
    %v858 = vunpack.c.l.b16 %v787
    %v859 = vunpack.c.l.b16 %v788
    %v860 = vunpack.c.l.b16 %v789
    %v861 = vunpack.c.l.b16 %v790
    %v862 = vunpack.c.l.b16 %v791
    %v863 = vunpack.c.l.b16 %v792
    %v864 = vunpack.c.l.b16 %v793
    %v865 = vunpack.c.l.b16 %v794
    %v866 = vunpack.c.l.b16 %v795
    %v867 = vunpack.c.l.b16 %v796
    %v868 = vpack.c.b16 %v837, %v836
    %v869 = vpack.c.b16 %v839, %v838
    %v870 = vpack.c.b16 %v841, %v840
    %v871 = vpack.c.b16 %v843, %v842
    %v872 = vpack.c.b16 %v845, %v844
    %v873 = vpack.c.b16 %v847, %v846
    %v874 = vpack.c.b16 %v849, %v848
    %v875 = vpack.c.b16 %v851, %v850
    %v876 = vpack.c.b16 %v853, %v852
    %v877 = vpack.c.b16 %v855, %v854
    %v878 = vpack.c.b16 %v857, %v856
    %v879 = vpack.c.b16 %v859, %v858
    %v880 = vpack.c.b16 %v861, %v860
    %v881 = vpack.c.b16 %v863, %v862
    %v882 = vpack.c.b16 %v865, %v864
    %v883 = vpack.c.b16 %v867, %v866
    %900 = vmatprep.subr.bf16.mxu0 0
    %901 = vmatpush1.bf16.msra.mxu0 %v868
    %902 = vmatprep.subr.bf16.mxu0 0
    %903 = vmatpush1.bf16.msra.mxu0 %v869
    %904 = vmatprep.subr.bf16.mxu0 0
    %905 = vmatpush1.bf16.msra.mxu0 %v870
    %906 = vmatprep.subr.bf16.mxu0 0
    %907 = vmatpush1.bf16.msra.mxu0 %v871
    %908 = vmatprep.subr.bf16.mxu0 0
    %909 = vmatpush1.bf16.msra.mxu0 %v872
    %910 = vmatprep.subr.bf16.mxu0 0
    %911 = vmatpush1.bf16.msra.mxu0 %v873
    %912 = vmatprep.subr.bf16.mxu0 0
    %913 = vmatpush1.bf16.msra.mxu0 %v874
    %914 = vmatprep.subr.bf16.mxu0 0
    %915 = vmatpush1.bf16.msra.mxu0 %v875
    %916 = vmatprep.subr.bf16.mxu0 0
    %917 = vmatpush1.bf16.msra.mxu0 %v876
    %918 = vmatprep.subr.bf16.mxu0 0
    %919 = vmatpush1.bf16.msra.mxu0 %v877
    %920 = vmatprep.subr.bf16.mxu0 0
    %921 = vmatpush1.bf16.msra.mxu0 %v878
    %922 = vmatprep.subr.bf16.mxu0 0
    %923 = vmatpush1.bf16.msra.mxu0 %v879
    %924 = vmatprep.subr.bf16.mxu0 0
    %925 = vmatpush1.bf16.msra.mxu0 %v880
    %926 = vmatprep.subr.bf16.mxu0 0
    %927 = vmatpush1.bf16.msra.mxu0 %v881
    %928 = vmatprep.subr.bf16.mxu0 0
    %929 = vmatpush1.bf16.msra.mxu0 %v882
    %930 = vmatprep.subr.bf16.mxu0 0
    %931 = vmatpush1.bf16.msra.mxu0 %v883
    %932 = vmatprep.mubr.bf16.mxu0 %v764
    %933 = vmatmul.mubr.bf16.gmra.mrb[0].mxu0 %v763
    %v934 = vpop.f32.mrb[0].mxu0
    %v935 = vadd.f32 %v802, %v934
    %v936 = vpop.f32.mrb[0].mxu0
    %v937 = vpop.f32.mrb[0].mxu0
    %v938 = vadd.f32 %v802, %v937
    %v939 = vpop.f32.mrb[0].mxu0
    %940 = vdwg.mxu0
    %v941 = vmax.f32 %v935, 0.0
    %v942 = vmax.f32 %v938, 0.0
    %v943 = vpack.c.bf16 %v942, %v941
    %v944 = vld [vmem:[#allocation10] sm:$0xf]
    %v945 = vld [vmem:[#allocation10 + $0x4] sm:$0xf]
    %v946 = vld [vmem:[#allocation10 + $0x8] sm:$0xf]
    %v947 = vld [vmem:[#allocation10 + $0xc] sm:$0xf]
    %v948 = vld [vmem:[#allocation10 + $0x10] sm:$0xf]
    %v949 = vld [vmem:[#allocation10 + $0x14] sm:$0xf]
    %v950 = vld [vmem:[#allocation10 + $0x18] sm:$0xf]
    %v951 = vld [vmem:[#allocation10 + $0x1c] sm:$0xf]
    %v952 = vld [vmem:[#allocation10 + $0x20] sm:$0xf]
    %v953 = vld [vmem:[#allocation10 + $0x24] sm:$0xf]
    %v954 = vld [vmem:[#allocation10 + $0x28] sm:$0xf]
    %v955 = vld [vmem:[#allocation10 + $0x2c] sm:$0xf]
    %v956 = vld [vmem:[#allocation10 + $0x30] sm:$0xf]
    %v957 = vld [vmem:[#allocation10 + $0x34] sm:$0xf]
    %v958 = vld [vmem:[#allocation10 + $0x38] sm:$0xf]
    %v959 = vld [vmem:[#allocation10 + $0x3c] sm:$0xf]
    %v960 = vld [vmem:[%s8] sm:$0x1]
    %v962 = vlaneseq
    %v963 = vshrl.u32 %v962, 7
    %v964 = vsub.s32 0, %v963
    %v965 = vrot.slane %v960, %v964
    %v983 = vunpack.c.l.b16 %v944
    %v984 = vunpack.c.l.b16 %v945
    %v985 = vunpack.c.l.b16 %v946
    %v986 = vunpack.c.l.b16 %v947
    %v987 = vunpack.c.l.b16 %v948
    %v988 = vunpack.c.l.b16 %v949
    %v989 = vunpack.c.l.b16 %v950
    %v990 = vunpack.c.l.b16 %v951
    %v991 = vunpack.c.l.b16 %v952
    %v992 = vunpack.c.l.b16 %v953
    %v993 = vunpack.c.l.b16 %v954
    %v994 = vunpack.c.l.b16 %v955
    %v995 = vunpack.c.l.b16 %v956
    %v996 = vunpack.c.l.b16 %v957
    %v997 = vunpack.c.l.b16 %v958
    %v998 = vunpack.c.l.b16 %v959
    %v999 = vpack.c.b16 %v984, %v983
    %v1000 = vpack.c.b16 %v986, %v985
    %v1001 = vpack.c.b16 %v988, %v987
    %v1002 = vpack.c.b16 %v990, %v989
    %v1003 = vpack.c.b16 %v992, %v991
    %v1004 = vpack.c.b16 %v994, %v993
    %v1005 = vpack.c.b16 %v996, %v995
    %v1006 = vpack.c.b16 %v998, %v997
    %1015 = vmatprep.subr.bf16.mxu0 0
    %1016 = vmatpush1.bf16.msra.mxu0 %v999
    %1017 = vmatprep.subr.bf16.mxu0 0
    %1018 = vmatpush1.bf16.msra.mxu0 %v1000
    %1019 = vmatprep.subr.bf16.mxu0 0
    %1020 = vmatpush1.bf16.msra.mxu0 %v1001
    %1021 = vmatprep.subr.bf16.mxu0 0
    %1022 = vmatpush1.bf16.msra.mxu0 %v1002
    %1023 = vmatprep.subr.bf16.mxu0 0
    %1024 = vmatpush1.bf16.msra.mxu0 %v1003
    %1025 = vmatprep.subr.bf16.mxu0 0
    %1026 = vmatpush1.bf16.msra.mxu0 %v1004
    %1027 = vmatprep.subr.bf16.mxu0 0
    %1028 = vmatpush1.bf16.msra.mxu0 %v1005
    %1029 = vmatprep.subr.bf16.mxu0 0
    %1030 = vmatpush1.bf16.msra.mxu0 %v1006
    %1031 = vmatprep.subr.bf16.mxu0 0
    %1032 = vmatpush1.bf16.msra.mxu0 0
    %1033 = vmatprep.subr.bf16.mxu0 0
    %1034 = vmatpush1.bf16.msra.mxu0 0
    %1035 = vmatprep.subr.bf16.mxu0 0
    %1036 = vmatpush1.bf16.msra.mxu0 0
    %1037 = vmatprep.subr.bf16.mxu0 0
    %1038 = vmatpush1.bf16.msra.mxu0 0
    %1039 = vmatprep.subr.bf16.mxu0 0
    %1040 = vmatpush1.bf16.msra.mxu0 0
    %1041 = vmatprep.subr.bf16.mxu0 0
    %1042 = vmatpush1.bf16.msra.mxu0 0
    %1043 = vmatprep.subr.bf16.mxu0 0
    %1044 = vmatpush1.bf16.msra.mxu0 0
    %1045 = vmatprep.subr.bf16.mxu0 0
    %1046 = vmatpush1.bf16.msra.mxu0 0
    %1047 = vmatprep.mubr.bf16.mxu0 0
    %1048 = vmatmul.mubr.bf16.gmra.mrb[0].mxu0 %v943
    %v1049 = vpop.f32.mrb[0].mxu0
    %v1050 = vadd.f32 %v965, %v1049
    %v1051 = vpop.f32.mrb[0].mxu0
    %v1052 = vpop.f32.mrb[0].mxu0
    %v1053 = vadd.f32 %v965, %v1052
    %v1054 = vpop.f32.mrb[0].mxu0
    %1055 = vdwg.mxu0
    %v1056 = vsub.f32 0.0, %v1050
    %v1057 = vsub.f32 0.0, %v1053
    %v1058 = vmul.f32 %v1056, 1.442695
    %v1059 = vpow.pop %v1058
    %v1060 = vmul.f32 %v1057, 1.442695
    %v1061 = vpow.pop %v1060
    %v1062 = vadd.f32 %v1059, 1.0
    %v1063 = vadd.f32 %v1061, 1.0
    %v1064 = vrcp.pop %v1062
    %v1065 = vrcp.pop %v1063
    %1066 = vst [vmem:[#allocation11] sm:$0xff] %v1064
    %1067 = vst [vmem:[#allocation11 + $0x8] sm:$0xff] %v1065
    // Predicated region
    $region58: #{tpu_custom_call.1} parent=1 // pred_check
      _
    $region59: #{tpu_custom_call.1} parent=1 // pred_check_branch
      %1069 = sbr.rel (0) target = $region61
    $region60: #{tpu_custom_call.1} parent=1 // pred_region
      %s1071 = ssub.s32 256, 256
      %1072 = vsyncadd [#allocation4], %s1071
      %s1073 = sshll.u32 [#allocation11], 4
      %s1074 = int_to_ptr.vmem [resolvable:$true] %s1073
      %1079 = dma.vmem_to_hbm [thread:$0]  %s1074, 256, %s9, [#allocation4], 128, 128, 8
    $region61: #{tpu_custom_call.1} parent=1 // pred_fallthru
      _
    // Predicated region
    $region62: #{tpu_custom_call.1} parent=1 // pred_check
      _
    $region63: #{tpu_custom_call.1} parent=1 // pred_check_branch
      %1081 = sbr.rel (0) target = $region65
    $region64: #{tpu_custom_call.1} parent=1 // pred_region
      %1082 = dma.done [#allocation4], 256
    $region65: #{tpu_custom_call.1} parent=1 // pred_fallthru
      _
    %1083 = vsyncpa [#allocation3], 1
    %1084 = vsyncpa [#allocation6], 1
    %1085 = vsyncpa [#allocation9], 1
    %1086 = vsyncpa [#allocation4], 1

</llo_original>
